<compile_context>
chip_gen: v7x
topology: tpu7x:2x2x1
jax: 0.10.0
libtpu: 0.0.40
codegen_flags: <defaults>
</compile_context>

<pallas_src>
import functools

import jax
import jax.numpy as jnp
from jax import lax
from jax.experimental import pallas as pl
from jax.experimental.pallas import tpu as pltpu


def _basic_block_kernel(H, W, c1, aligned, b_blk,
                        x_ref,
                        w1_ref, b1_ref,
                        w2_ref, b2_ref,
                        w3_ref, b3_ref,
                        o_ref):
    HW = H * W
    f32 = jnp.float32
    bf16 = jnp.bfloat16
    half = o_ref.shape[1]

    # Hoisted parameter loads (shared by every image in this block).
    w1 = w1_ref[...]          # (c2, c2) bf16, bn1 scale folded in
    w2 = w2_ref[...]          # (c2, 9)  f32,  bn2 scale folded in
    w3 = w3_ref[...]          # (c2, c2) bf16, bn3 scale folded in
    b1 = b1_ref[...]          # (c2, 1) f32 folded bn shifts
    b2 = b2_ref[...]
    b3 = b3_ref[...]

    # Horizontal-boundary masks for the depthwise taps (hoisted out of loops).
    col = lax.broadcasted_iota(jnp.int32, (1, HW), 1) % W
    not_first_col = col >= 1          # valid output positions for a dw = -1 tap
    not_last_col = col <= W - 2       # valid output positions for a dw = +1 tap

    P = W + 1                         # pad covers the corner taps (|shift| = W+1)

    for b in range(b_blk):
        if aligned:                   # split_ratio == 0.5: aligned sub-blocks
            x1 = x_ref[b, 0]          # (half, HW) passthrough branch
            x2 = x_ref[b, 1]          # (half, HW) conv-branch input
        else:
            xb = x_ref[b]             # (C, HW)
            x1 = xb[:c1, :]
            x2 = xb[c1:, :]
        c2 = x2.shape[0]

        # ---- conv1 (1x1, no bias) + folded bn1 + relu  (bf16 MXU, f32 acc) ----
        h = jnp.dot(w1, x2.astype(bf16), preferred_element_type=f32)
        h = jnp.maximum(h + b1, 0.0)

        # ---- conv2 (3x3 depthwise, pad=1, no bias) + folded bn2 ----
        # In-register zero-filled lane shifts: pad the flattened spatial axis
        # by W+1 on each side once, then take 9 static slices.  Vertical
        # out-of-image taps land in the zero pad; only horizontal row wrap
        # needs a mask.
        zpad = jnp.zeros((c2, P), f32)
        hp = jnp.concatenate([zpad, h, zpad], axis=1)     # (c2, HW + 2*(W+1))
        acc = jnp.zeros((c2, HW), f32)
        for dh in (-1, 0, 1):
            for dw in (-1, 0, 1):
                k = dh * W + dw
                tap = hp[:, P + k:P + k + HW]             # shift of h by k, zero fill
                if dw == -1:
                    tap = jnp.where(not_first_col, tap, 0.0)
                elif dw == 1:
                    tap = jnp.where(not_last_col, tap, 0.0)
                t = (dh + 1) * 3 + (dw + 1)
                acc = acc + tap * w2[:, t:t + 1]
        h = acc + b2

        # ---- conv3 (1x1, no bias) + folded bn3 + relu  (bf16 MXU, f32 acc) ----
        h = jnp.dot(w3, h.astype(bf16), preferred_element_type=f32)
        h = jnp.maximum(h + b3, 0.0)
        branch = h.astype(o_ref.dtype)

        # ---- concat([x1, branch], channel) + channel shuffle (groups=2) ----
        # o[n, j, g, :] holds shuffled output channel 2*j + g, so the wrapper
        # reshape to (N, C, H, W) is exactly the shuffled result (free).
        if aligned:
            o_ref[b, :, 0, :] = x1
            o_ref[b, :, 1, :] = branch
        else:
            cat = jnp.concatenate([x1.astype(o_ref.dtype), branch], axis=0)
            o_ref[b, :, 0, :] = cat[:half, :]
            o_ref[b, :, 1, :] = cat[half:, :]


def _fold_bn(gamma, beta, mean, var, eps):
    scale = gamma.astype(jnp.float32) / jnp.sqrt(var.astype(jnp.float32) + eps)
    shift = beta.astype(jnp.float32) - mean.astype(jnp.float32) * scale
    return scale.reshape(-1, 1), shift.reshape(-1, 1)


def _pick_batch_block(n, per_image_bytes):
    """Largest divisor of n whose block fits ~4 MiB and keeps >=2 grid steps."""
    budget = 4 * 1024 * 1024
    max_imgs = max(1, budget // max(per_image_bytes, 1))
    best = 1
    for b in range(1, n + 1):
        if n % b != 0 or b > max_imgs:
            continue
        if n >= 2 and n // b < 2:     # keep both v7x TensorCores busy
            continue
        best = b
    return best


def basic_block_forward(x, params, split_ratio=0.5, eps=1e-5):
    """Pallas TPU forward of BasicBlock (inference-mode BatchNorm)."""
    n, c, h, w = x.shape
    hw = h * w
    c1 = int(c * split_ratio)         # same truncation as the PyTorch module
    c2 = c - c1
    assert 0 < c1 < c, "split_ratio must leave channels on both branches"
    assert c % 2 == 0, "channel shuffle with groups=2 needs an even channel count"
    half = c // 2
    aligned = (c1 == half)            # module default (split_ratio = 0.5)

    # Fold BN into per-channel scale/shift, then fold the scales into weights.
    s1, b1 = _fold_bn(params["bn1_gamma"], params["bn1_beta"],
                      params["bn1_mean"], params["bn1_var"], eps)
    s2, b2 = _fold_bn(params["bn2_gamma"], params["bn2_beta"],
                      params["bn2_mean"], params["bn2_var"], eps)
    s3, b3 = _fold_bn(params["bn3_gamma"], params["bn3_beta"],
                      params["bn3_mean"], params["bn3_var"], eps)
    w1 = (params["conv1_w"].reshape(c2, c2).astype(jnp.float32) * s1).astype(jnp.bfloat16)
    w2 = params["conv2_w"].reshape(c2, 9).astype(jnp.float32) * s2     # taps stay f32 (VPU)
    w3 = (params["conv3_w"].reshape(c2, c2).astype(jnp.float32) * s3).astype(jnp.bfloat16)

    # How many images share one grid step (amortize ~0.35us/step overhead).
    per_image_bytes = 2 * c * hw * x.dtype.itemsize + 8 * c2 * hw * 4
    b_blk = _pick_batch_block(n, per_image_bytes)
    grid = (n // b_blk,)

    if aligned:
        # Free row-major view; both split halves become aligned sub-blocks.
        x_view = x.reshape(n, 2, half, hw)
        x_spec = pl.BlockSpec((b_blk, 2, half, hw), lambda i: (i, 0, 0, 0))
    else:
        x_view = x.reshape(n, c, hw)
        x_spec = pl.BlockSpec((b_blk, c, hw), lambda i: (i, 0, 0))

    mat = pl.BlockSpec((c2, c2), lambda i: (0, 0))
    vec = pl.BlockSpec((c2, 1), lambda i: (0, 0))
    kernel = functools.partial(_basic_block_kernel, h, w, c1, aligned, b_blk)

    out = pl.pallas_call(
        kernel,
        out_shape=jax.ShapeDtypeStruct((n, half, 2, hw), x.dtype),
        grid_spec=pltpu.PrefetchScalarGridSpec(
            num_scalar_prefetch=0,
            grid=grid,
            in_specs=[
                x_spec,                                           # x (both halves)
                mat, vec,                                         # w1 (bf16), b1
                pl.BlockSpec((c2, 9), lambda i: (0, 0)), vec,     # w2, b2
                mat, vec,                                         # w3 (bf16), b3
            ],
            out_specs=pl.BlockSpec((b_blk, half, 2, hw), lambda i: (i, 0, 0, 0)),
        ),
        compiler_params=pltpu.CompilerParams(
            dimension_semantics=("parallel",),     # batch axis -> 2 TCs on v7x
            vmem_limit_bytes=32 * 1024 * 1024,
        ),
    )(x_view, w1, b1, w2, b2, w3, b3)

    # (n, half, 2, hw) -> (n, C, H, W) is a contiguous split/merge (free) and
    # lands exactly in channel-shuffled order.
    return out.reshape(n, c, h, w)


def reference_forward(x, params, split_ratio=0.5, eps=1e-5):
    """Pure-JAX reference mirroring the PyTorch module (inference BN)."""
    n, c, h, w = x.shape
    c1 = int(c * split_ratio)
    c2 = c - c1

    def bn(y, prefix):
        g = params[prefix + "_gamma"].reshape(1, -1, 1, 1)
        b = params[prefix + "_beta"].reshape(1, -1, 1, 1)
        m = params[prefix + "_mean"].reshape(1, -1, 1, 1)
        v = params[prefix + "_var"].reshape(1, -1, 1, 1)
        return (y - m) * (g / jnp.sqrt(v + eps)) + b

    x1, x2 = x[:, :c1], x[:, c1:]
    out = jnp.einsum("oi,nihw->nohw", params["conv1_w"][:, :, 0, 0], x2)
    out = jax.nn.relu(bn(out, "bn1"))
    out = lax.conv_general_dilated(
        out, params["conv2_w"], window_strides=(1, 1),
        padding=((1, 1), (1, 1)),
        dimension_numbers=("NCHW", "OIHW", "NCHW"),
        feature_group_count=c2)
    out = bn(out, "bn2")
    out = jnp.einsum("oi,nihw->nohw", params["conv3_w"][:, :, 0, 0], out)
    out = jax.nn.relu(bn(out, "bn3"))
    cat = jnp.concatenate([x1, out], axis=1)
    return (cat.reshape(n, 2, c // 2, h, w)
               .transpose(0, 2, 1, 3, 4)
               .reshape(n, c, h, w))


if __name__ == "__main__":
    key = jax.random.PRNGKey(0)
    ks = jax.random.split(key, 16)

    N, C, H, W = 2, 4, 16, 16
    ratio = 0.5
    c2 = C - int(C * ratio)

    x = jax.random.normal(ks[0], (N, C, H, W), dtype=jnp.float32)
    params = {
        "conv1_w": 0.5 * jax.random.normal(ks[1], (c2, c2, 1, 1), jnp.float32),
        "conv2_w": 0.5 * jax.random.normal(ks[2], (c2, 1, 3, 3), jnp.float32),
        "conv3_w": 0.5 * jax.random.normal(ks[3], (c2, c2, 1, 1), jnp.float32),
        "bn1_gamma": 0.5 + jax.random.uniform(ks[4], (c2,), jnp.float32),
        "bn1_beta": 0.1 * jax.random.normal(ks[5], (c2,), jnp.float32),
        "bn1_mean": 0.1 * jax.random.normal(ks[6], (c2,), jnp.float32),
        "bn1_var": 0.5 + jax.random.uniform(ks[7], (c2,), jnp.float32),
        "bn2_gamma": 0.5 + jax.random.uniform(ks[8], (c2,), jnp.float32),
        "bn2_beta": 0.1 * jax.random.normal(ks[9], (c2,), jnp.float32),
        "bn2_mean": 0.1 * jax.random.normal(ks[10], (c2,), jnp.float32),
        "bn2_var": 0.5 + jax.random.uniform(ks[11], (c2,), jnp.float32),
        "bn3_gamma": 0.5 + jax.random.uniform(ks[12], (c2,), jnp.float32),
        "bn3_beta": 0.1 * jax.random.normal(ks[13], (c2,), jnp.float32),
        "bn3_mean": 0.1 * jax.random.normal(ks[14], (c2,), jnp.float32),
        "bn3_var": 0.5 + jax.random.uniform(ks[15], (c2,), jnp.float32),
    }

    y = basic_block_forward(x, params, split_ratio=ratio)
    jax.block_until_ready(y)

    ref = reference_forward(x, params, split_ratio=ratio)
    assert y.shape == ref.shape, (y.shape, ref.shape)
    max_err = float(jnp.max(jnp.abs(y - ref)))
    # bf16 MXU operands introduce ~0.5% relative error; stays well inside this.
    assert jnp.allclose(y, ref, atol=5e-2, rtol=2e-2), f"max abs err {max_err}"

    print("KERNEL_OK")
</pallas_src>

<mosaic_0001>
module attributes {stable_mosaic.version = 11 : i64} {
  func.func @_basic_block_kernel(%arg0: i32, %arg1: memref<1x2x2x256xf32, #tpu.memory_space<vmem>>, %arg2: memref<2x2xbf16, #tpu.memory_space<vmem>>, %arg3: memref<2x1xf32, #tpu.memory_space<vmem>>, %arg4: memref<2x9xf32, #tpu.memory_space<vmem>>, %arg5: memref<2x1xf32, #tpu.memory_space<vmem>>, %arg6: memref<2x2xbf16, #tpu.memory_space<vmem>>, %arg7: memref<2x1xf32, #tpu.memory_space<vmem>>, %arg8: memref<1x2x2x256xf32, #tpu.memory_space<vmem>>) attributes {dimension_semantics = [#tpu.dimension_semantics<parallel>], iteration_bounds = array<i64: 2>, scalar_prefetch = 0 : i64, scratch_operands = 0 : i64, tpu.core_type = #tpu.core_type<tc>, window_params = [{transform_indices = @transform_0, window_bounds = array<i64: 1, 2, 2, 256>}, {pipeline_mode = #tpu.pipeline_mode<synchronous>, transform_indices = @transform_1, window_bounds = array<i64: 2, 2>}, {pipeline_mode = #tpu.pipeline_mode<synchronous>, transform_indices = @transform_2, window_bounds = array<i64: 2, 1>}, {pipeline_mode = #tpu.pipeline_mode<synchronous>, transform_indices = @transform_3, window_bounds = array<i64: 2, 9>}, {pipeline_mode = #tpu.pipeline_mode<synchronous>, transform_indices = @transform_4, window_bounds = array<i64: 2, 1>}, {pipeline_mode = #tpu.pipeline_mode<synchronous>, transform_indices = @transform_5, window_bounds = array<i64: 2, 2>}, {pipeline_mode = #tpu.pipeline_mode<synchronous>, transform_indices = @transform_6, window_bounds = array<i64: 2, 1>}, {transform_indices = @transform_7, window_bounds = array<i64: 1, 2, 2, 256>}]} {
    %c0 = arith.constant 0 : index
    %c0_0 = arith.constant 0 : index
    %0 = vector.load %arg2[%c0, %c0_0] : memref<2x2xbf16, #tpu.memory_space<vmem>>, vector<2x2xbf16>
    %c0_1 = arith.constant 0 : index
    %c0_2 = arith.constant 0 : index
    %1 = vector.load %arg4[%c0_1, %c0_2] : memref<2x9xf32, #tpu.memory_space<vmem>>, vector<2x9xf32>
    %c0_3 = arith.constant 0 : index
    %c0_4 = arith.constant 0 : index
    %2 = vector.load %arg6[%c0_3, %c0_4] : memref<2x2xbf16, #tpu.memory_space<vmem>>, vector<2x2xbf16>
    %c0_5 = arith.constant 0 : index
    %c0_6 = arith.constant 0 : index
    %3 = vector.load %arg3[%c0_5, %c0_6] : memref<2x1xf32, #tpu.memory_space<vmem>>, vector<2x1xf32>
    %c0_7 = arith.constant 0 : index
    %c0_8 = arith.constant 0 : index
    %4 = vector.load %arg5[%c0_7, %c0_8] : memref<2x1xf32, #tpu.memory_space<vmem>>, vector<2x1xf32>
    %c0_9 = arith.constant 0 : index
    %c0_10 = arith.constant 0 : index
    %5 = vector.load %arg7[%c0_9, %c0_10] : memref<2x1xf32, #tpu.memory_space<vmem>>, vector<2x1xf32>
    %6 = tpu.iota {dimensions = array<i32: 1>} : vector<1x256xi32>
    %c16_i32 = arith.constant 16 : i32
    %c0_i32 = arith.constant 0 : i32
    %7 = arith.cmpi eq, %c16_i32, %c0_i32 : i32
    %c1_i32 = arith.constant 1 : i32
    %8 = arith.select %7, %c1_i32, %c16_i32 : i32
    %9 = vector.broadcast %8 : i32 to vector<1x256xi32>
    %10 = arith.remsi %6, %9 : vector<1x256xi32>
    %c0_i32_11 = arith.constant 0 : i32
    %11 = vector.broadcast %c0_i32_11 : i32 to vector<1x256xi32>
    %12 = arith.cmpi ne, %10, %11 : vector<1x256xi32>
    %c0_i32_12 = arith.constant 0 : i32
    %13 = vector.broadcast %c0_i32_12 : i32 to vector<1x256xi32>
    %14 = arith.cmpi slt, %10, %13 : vector<1x256xi32>
    %c0_i32_13 = arith.constant 0 : i32
    %15 = arith.cmpi slt, %8, %c0_i32_13 : i32
    %16 = vector.broadcast %15 : i1 to vector<1x256xi1>
    %17 = vector.broadcast %16 : vector<1x256xi1> to vector<1x256xi1>
    %18 = arith.xori %14, %17 : vector<1x256xi1>
    %19 = arith.andi %18, %12 : vector<1x256xi1>
    %20 = vector.broadcast %8 : i32 to vector<1x256xi32>
    %21 = arith.addi %10, %20 : vector<1x256xi32>
    %22 = arith.select %19, %21, %10 : vector<1x256xi1>, vector<1x256xi32>
    %c1_i32_14 = arith.constant 1 : i32
    %23 = vector.broadcast %c1_i32_14 : i32 to vector<1x256xi32>
    %24 = arith.cmpi sge, %22, %23 : vector<1x256xi32>
    %c14_i32 = arith.constant 14 : i32
    %25 = vector.broadcast %c14_i32 : i32 to vector<1x256xi32>
    %26 = arith.cmpi sle, %22, %25 : vector<1x256xi32>
    %c0_15 = arith.constant 0 : index
    %c0_16 = arith.constant 0 : index
    %c0_17 = arith.constant 0 : index
    %c0_18 = arith.constant 0 : index
    %27 = vector.load %arg1[%c0_15, %c0_16, %c0_17, %c0_18] : memref<1x2x2x256xf32, #tpu.memory_space<vmem>>, vector<1x1x2x256xf32>
    %28 = vector.shape_cast %27 : vector<1x1x2x256xf32> to vector<2x256xf32>
    %c0_19 = arith.constant 0 : index
    %c1 = arith.constant 1 : index
    %c0_20 = arith.constant 0 : index
    %c0_21 = arith.constant 0 : index
    %29 = vector.load %arg1[%c0_19, %c1, %c0_20, %c0_21] : memref<1x2x2x256xf32, #tpu.memory_space<vmem>>, vector<1x1x2x256xf32>
    %30 = vector.shape_cast %29 : vector<1x1x2x256xf32> to vector<2x256xf32>
    %31 = arith.truncf %30 : vector<2x256xf32> to vector<2x256xbf16>
    %cst = arith.constant dense<0.000000e+00> : vector<2x256xf32>
    %32 = tpu.matmul %0, %31, %cst {dimension_numbers = #tpu.dot_dimension_numbers<[1], [0], [0], [1], [0, 0, 1, 1], [], []>} : vector<2x2xbf16>, vector<2x256xbf16>, vector<2x256xf32> -> vector<2x256xf32>
    %33 = vector.broadcast %3 : vector<2x1xf32> to vector<2x256xf32>
    %34 = arith.addf %32, %33 : vector<2x256xf32>
    %cst_22 = arith.constant 0.000000e+00 : f32
    %35 = vector.broadcast %cst_22 : f32 to vector<2x256xf32>
    %36 = arith.maximumf %34, %35 : vector<2x256xf32>
    %cst_23 = arith.constant 0.000000e+00 : f32
    %37 = vector.broadcast %cst_23 : f32 to vector<2x17xf32>
    %38 = tpu.concatenate %37, %36, %37 in 1 : vector<2x17xf32>, vector<2x256xf32>, vector<2x17xf32> -> vector<2x290xf32>
    %cst_24 = arith.constant 0.000000e+00 : f32
    %39 = vector.broadcast %cst_24 : f32 to vector<2x256xf32>
    %40 = vector.extract_strided_slice %38 {offsets = [0, 0], sizes = [2, 256], strides = [1, 1]} : vector<2x290xf32> to vector<2x256xf32>
    %cst_25 = arith.constant 0.000000e+00 : f32
    %41 = vector.shape_cast %24 : vector<1x256xi1> to vector<1x256xi1>
    %42 = vector.broadcast %41 : vector<1x256xi1> to vector<2x256xi1>
    %43 = vector.broadcast %cst_25 : f32 to vector<2x256xf32>
    %44 = arith.select %42, %40, %43 : vector<2x256xi1>, vector<2x256xf32>
    %45 = vector.extract_strided_slice %1 {offsets = [0, 0], sizes = [2, 1], strides = [1, 1]} : vector<2x9xf32> to vector<2x1xf32>
    %46 = vector.broadcast %45 : vector<2x1xf32> to vector<2x256xf32>
    %47 = arith.mulf %44, %46 : vector<2x256xf32>
    %48 = arith.addf %39, %47 : vector<2x256xf32>
    %49 = vector.extract_strided_slice %38 {offsets = [0, 1], sizes = [2, 256], strides = [1, 1]} : vector<2x290xf32> to vector<2x256xf32>
    %50 = vector.extract_strided_slice %1 {offsets = [0, 1], sizes = [2, 1], strides = [1, 1]} : vector<2x9xf32> to vector<2x1xf32>
    %51 = vector.broadcast %50 : vector<2x1xf32> to vector<2x256xf32>
    %52 = arith.mulf %49, %51 : vector<2x256xf32>
    %53 = arith.addf %48, %52 : vector<2x256xf32>
    %54 = vector.extract_strided_slice %38 {offsets = [0, 2], sizes = [2, 256], strides = [1, 1]} : vector<2x290xf32> to vector<2x256xf32>
    %cst_26 = arith.constant 0.000000e+00 : f32
    %55 = vector.shape_cast %26 : vector<1x256xi1> to vector<1x256xi1>
    %56 = vector.broadcast %55 : vector<1x256xi1> to vector<2x256xi1>
    %57 = vector.broadcast %cst_26 : f32 to vector<2x256xf32>
    %58 = arith.select %56, %54, %57 : vector<2x256xi1>, vector<2x256xf32>
    %59 = vector.extract_strided_slice %1 {offsets = [0, 2], sizes = [2, 1], strides = [1, 1]} : vector<2x9xf32> to vector<2x1xf32>
    %60 = vector.broadcast %59 : vector<2x1xf32> to vector<2x256xf32>
    %61 = arith.mulf %58, %60 : vector<2x256xf32>
    %62 = arith.addf %53, %61 : vector<2x256xf32>
    %63 = vector.extract_strided_slice %38 {offsets = [0, 16], sizes = [2, 256], strides = [1, 1]} : vector<2x290xf32> to vector<2x256xf32>
    %cst_27 = arith.constant 0.000000e+00 : f32
    %64 = vector.shape_cast %24 : vector<1x256xi1> to vector<1x256xi1>
    %65 = vector.broadcast %64 : vector<1x256xi1> to vector<2x256xi1>
    %66 = vector.broadcast %cst_27 : f32 to vector<2x256xf32>
    %67 = arith.select %65, %63, %66 : vector<2x256xi1>, vector<2x256xf32>
    %68 = vector.extract_strided_slice %1 {offsets = [0, 3], sizes = [2, 1], strides = [1, 1]} : vector<2x9xf32> to vector<2x1xf32>
    %69 = vector.broadcast %68 : vector<2x1xf32> to vector<2x256xf32>
    %70 = arith.mulf %67, %69 : vector<2x256xf32>
    %71 = arith.addf %62, %70 : vector<2x256xf32>
    %72 = vector.extract_strided_slice %38 {offsets = [0, 17], sizes = [2, 256], strides = [1, 1]} : vector<2x290xf32> to vector<2x256xf32>
    %73 = vector.extract_strided_slice %1 {offsets = [0, 4], sizes = [2, 1], strides = [1, 1]} : vector<2x9xf32> to vector<2x1xf32>
    %74 = vector.broadcast %73 : vector<2x1xf32> to vector<2x256xf32>
    %75 = arith.mulf %72, %74 : vector<2x256xf32>
    %76 = arith.addf %71, %75 : vector<2x256xf32>
    %77 = vector.extract_strided_slice %38 {offsets = [0, 18], sizes = [2, 256], strides = [1, 1]} : vector<2x290xf32> to vector<2x256xf32>
    %cst_28 = arith.constant 0.000000e+00 : f32
    %78 = vector.shape_cast %26 : vector<1x256xi1> to vector<1x256xi1>
    %79 = vector.broadcast %78 : vector<1x256xi1> to vector<2x256xi1>
    %80 = vector.broadcast %cst_28 : f32 to vector<2x256xf32>
    %81 = arith.select %79, %77, %80 : vector<2x256xi1>, vector<2x256xf32>
    %82 = vector.extract_strided_slice %1 {offsets = [0, 5], sizes = [2, 1], strides = [1, 1]} : vector<2x9xf32> to vector<2x1xf32>
    %83 = vector.broadcast %82 : vector<2x1xf32> to vector<2x256xf32>
    %84 = arith.mulf %81, %83 : vector<2x256xf32>
    %85 = arith.addf %76, %84 : vector<2x256xf32>
    %86 = vector.extract_strided_slice %38 {offsets = [0, 32], sizes = [2, 256], strides = [1, 1]} : vector<2x290xf32> to vector<2x256xf32>
    %cst_29 = arith.constant 0.000000e+00 : f32
    %87 = vector.shape_cast %24 : vector<1x256xi1> to vector<1x256xi1>
    %88 = vector.broadcast %87 : vector<1x256xi1> to vector<2x256xi1>
    %89 = vector.broadcast %cst_29 : f32 to vector<2x256xf32>
    %90 = arith.select %88, %86, %89 : vector<2x256xi1>, vector<2x256xf32>
    %91 = vector.extract_strided_slice %1 {offsets = [0, 6], sizes = [2, 1], strides = [1, 1]} : vector<2x9xf32> to vector<2x1xf32>
    %92 = vector.broadcast %91 : vector<2x1xf32> to vector<2x256xf32>
    %93 = arith.mulf %90, %92 : vector<2x256xf32>
    %94 = arith.addf %85, %93 : vector<2x256xf32>
    %95 = vector.extract_strided_slice %38 {offsets = [0, 33], sizes = [2, 256], strides = [1, 1]} : vector<2x290xf32> to vector<2x256xf32>
    %96 = vector.extract_strided_slice %1 {offsets = [0, 7], sizes = [2, 1], strides = [1, 1]} : vector<2x9xf32> to vector<2x1xf32>
    %97 = vector.broadcast %96 : vector<2x1xf32> to vector<2x256xf32>
    %98 = arith.mulf %95, %97 : vector<2x256xf32>
    %99 = arith.addf %94, %98 : vector<2x256xf32>
    %100 = vector.extract_strided_slice %38 {offsets = [0, 34], sizes = [2, 256], strides = [1, 1]} : vector<2x290xf32> to vector<2x256xf32>
    %cst_30 = arith.constant 0.000000e+00 : f32
    %101 = vector.shape_cast %26 : vector<1x256xi1> to vector<1x256xi1>
    %102 = vector.broadcast %101 : vector<1x256xi1> to vector<2x256xi1>
    %103 = vector.broadcast %cst_30 : f32 to vector<2x256xf32>
    %104 = arith.select %102, %100, %103 : vector<2x256xi1>, vector<2x256xf32>
    %105 = vector.extract_strided_slice %1 {offsets = [0, 8], sizes = [2, 1], strides = [1, 1]} : vector<2x9xf32> to vector<2x1xf32>
    %106 = vector.broadcast %105 : vector<2x1xf32> to vector<2x256xf32>
    %107 = arith.mulf %104, %106 : vector<2x256xf32>
    %108 = arith.addf %99, %107 : vector<2x256xf32>
    %109 = vector.broadcast %4 : vector<2x1xf32> to vector<2x256xf32>
    %110 = arith.addf %108, %109 : vector<2x256xf32>
    %111 = arith.truncf %110 : vector<2x256xf32> to vector<2x256xbf16>
    %cst_31 = arith.constant dense<0.000000e+00> : vector<2x256xf32>
    %112 = tpu.matmul %2, %111, %cst_31 {dimension_numbers = #tpu.dot_dimension_numbers<[1], [0], [0], [1], [0, 0, 1, 1], [], []>} : vector<2x2xbf16>, vector<2x256xbf16>, vector<2x256xf32> -> vector<2x256xf32>
    %113 = vector.broadcast %5 : vector<2x1xf32> to vector<2x256xf32>
    %114 = arith.addf %112, %113 : vector<2x256xf32>
    %cst_32 = arith.constant 0.000000e+00 : f32
    %115 = vector.broadcast %cst_32 : f32 to vector<2x256xf32>
    %116 = arith.maximumf %114, %115 : vector<2x256xf32>
    %c0_33 = arith.constant 0 : index
    %c0_34 = arith.constant 0 : index
    %c0_35 = arith.constant 0 : index
    %c0_36 = arith.constant 0 : index
    %117 = vector.load %arg8[%c0_33, %c0_34, %c0_35, %c0_36] : memref<1x2x2x256xf32, #tpu.memory_space<vmem>>, vector<1x2x1x256xf32>
    %118 = vector.shape_cast %117 : vector<1x2x1x256xf32> to vector<2x256xf32>
    %119 = vector.shape_cast %28 : vector<2x256xf32> to vector<1x2x1x256xf32>
    tpu.vector_store %arg8[%c0_33, %c0_34, %c0_35, %c0_36], %119 {strides = array<i32>} : memref<1x2x2x256xf32, #tpu.memory_space<vmem>>, vector<1x2x1x256xf32>,
    %c0_37 = arith.constant 0 : index
    %c0_38 = arith.constant 0 : index
    %c1_39 = arith.constant 1 : index
    %c0_40 = arith.constant 0 : index
    %120 = vector.load %arg8[%c0_37, %c0_38, %c1_39, %c0_40] : memref<1x2x2x256xf32, #tpu.memory_space<vmem>>, vector<1x2x1x256xf32>
    %121 = vector.shape_cast %120 : vector<1x2x1x256xf32> to vector<2x256xf32>
    %122 = vector.shape_cast %116 : vector<2x256xf32> to vector<1x2x1x256xf32>
    tpu.vector_store %arg8[%c0_37, %c0_38, %c1_39, %c0_40], %122 {strides = array<i32>} : memref<1x2x2x256xf32, #tpu.memory_space<vmem>>, vector<1x2x1x256xf32>,
    return
  }
  func.func @transform_0(%arg0: i32) -> (i32, i32, i32, i32) {
    %c0_i32 = arith.constant 0 : i32
    %c0_i32_0 = arith.constant 0 : i32
    %c0_i32_1 = arith.constant 0 : i32
    %c0_i32_2 = arith.constant 0 : i32
    return %arg0, %c0_i32, %c0_i32_0, %c0_i32_1 : i32, i32, i32, i32
  }
  func.func @transform_1(%arg0: i32) -> (i32, i32) {
    %c0_i32 = arith.constant 0 : i32
    %c0_i32_0 = arith.constant 0 : i32
    %c0_i32_1 = arith.constant 0 : i32
    return %c0_i32, %c0_i32_0 : i32, i32
  }
  func.func @transform_2(%arg0: i32) -> (i32, i32) {
    %c0_i32 = arith.constant 0 : i32
    %c0_i32_0 = arith.constant 0 : i32
    %c0_i32_1 = arith.constant 0 : i32
    return %c0_i32, %c0_i32_0 : i32, i32
  }
  func.func @transform_3(%arg0: i32) -> (i32, i32) {
    %c0_i32 = arith.constant 0 : i32
    %c0_i32_0 = arith.constant 0 : i32
    %c0_i32_1 = arith.constant 0 : i32
    return %c0_i32, %c0_i32_0 : i32, i32
  }
  func.func @transform_4(%arg0: i32) -> (i32, i32) {
    %c0_i32 = arith.constant 0 : i32
    %c0_i32_0 = arith.constant 0 : i32
    %c0_i32_1 = arith.constant 0 : i32
    return %c0_i32, %c0_i32_0 : i32, i32
  }
  func.func @transform_5(%arg0: i32) -> (i32, i32) {
    %c0_i32 = arith.constant 0 : i32
    %c0_i32_0 = arith.constant 0 : i32
    %c0_i32_1 = arith.constant 0 : i32
    return %c0_i32, %c0_i32_0 : i32, i32
  }
  func.func @transform_6(%arg0: i32) -> (i32, i32) {
    %c0_i32 = arith.constant 0 : i32
    %c0_i32_0 = arith.constant 0 : i32
    %c0_i32_1 = arith.constant 0 : i32
    return %c0_i32, %c0_i32_0 : i32, i32
  }
  func.func @transform_7(%arg0: i32) -> (i32, i32, i32, i32) {
    %c0_i32 = arith.constant 0 : i32
    %c0_i32_0 = arith.constant 0 : i32
    %c0_i32_1 = arith.constant 0 : i32
    %c0_i32_2 = arith.constant 0 : i32
    return %arg0, %c0_i32, %c0_i32_0, %c0_i32_1 : i32, i32, i32, i32
  }
}

</mosaic_0001>

<llo_original>
// kernel: tpu_custom_call.1
$region0: #{tpu_custom_call.1}
  #allocation0 [shape = 'u32[]', space=smem, size = 0x4, offset = 0x4, fixed_abs, tag = 'smem constant byte address 0x4 - core index']
  #allocation1 [shape = 'u32[144,128]{1,0:T(1,128)}', space=vmem, size = 0x12000, scoped, tag = 'internal scratch']
  %s0 = inlined_call_operand.hbm [shape: f32[2,2,2,256], index: 0, kind: input, shape index: {}]
  %s1 = inlined_call_operand.vmem [shape: bf16[2,2], index: 1, kind: input, shape index: {}]
  %s2 = inlined_call_operand.vmem [shape: f32[2,1], index: 2, kind: input, shape index: {}]
  %s3 = inlined_call_operand.vmem [shape: f32[2,9], index: 3, kind: input, shape index: {}]
  %s4 = inlined_call_operand.vmem [shape: f32[2,1], index: 4, kind: input, shape index: {}]
  %s5 = inlined_call_operand.vmem [shape: bf16[2,2], index: 5, kind: input, shape index: {}]
  %s6 = inlined_call_operand.vmem [shape: f32[2,1], index: 6, kind: input, shape index: {}]
  %s7 = inlined_call_operand.hbm [shape: f32[2,2,2,256], index: 7, kind: output, shape index: {}]
  %s8 = sld [smem:[#allocation0]]
  $region65: #{tpu_custom_call.1} parent=0
    _
  %s10 = ssub.s32 1, %s8
  %s11 = scalar_select 0, %s10, %s8
  $region1: #{tpu_custom_call.1} parent=0
    #allocation2 [shape = 'u8[8192]{0}', space=vmem, size = 0x2000, scoped, tag = 'input window, operand 0']
    #allocation3 [shape = 's32[2]{0}', space=sflag, size = 0x8, scoped, tag = 'scoped memory for tpu_custom_call.1']
    #allocation4 [shape = 's32[2]{0}', space=sflag, size = 0x8, scoped, tag = 'scoped memory for tpu_custom_call.1']
    #allocation5 [shape = 'u8[8192]{0}', space=vmem, size = 0x2000, scoped, tag = 'output window, operand 0']
    %12 = vsyncpa [#allocation3], 0
    %s13 = scalar_lea.sflag [#allocation3], 1
    %14 = vsyncpa %s13, 0
    %15 = vsyncpa [#allocation4], 0
    %s16 = scalar_lea.sflag [#allocation4], 1
    %17 = vsyncpa %s16, 0
    loop: start=0, step=1, limit=4
    $region2: #{tpu_custom_call.1} parent=1 // loop_pre_header
      _
    $region3: #{tpu_custom_call.1} parent=1 // loop_header
      %s19 = sphi 0, %s23
      %p20 = scmp.ge.s32.totalorder %s19, 4
      %s29 = sphi 0, %s31
      %s32 = sphi 0, %s29
      %s33 = sphi 0, %s32
      %s49 = sphi 0, %s33
      %s53 = sphi 0, %s53
      %s55 = sphi 0, %s53
      %s56 = sphi 0, %s55
      %s70 = sphi 0, %s56
      %s74 = sphi 0, %s74
      %s76 = sphi 0, %s74
      %s77 = sphi 0, %s76
      %s91 = sphi 0, %s77
      %s95 = sphi 0, %s95
      %s97 = sphi 0, %s95
      %s98 = sphi 0, %s97
      %s112 = sphi 0, %s98
      %s116 = sphi 0, %s116
      %s118 = sphi 0, %s116
      %s119 = sphi 0, %s118
      %s133 = sphi 0, %s119
      %s137 = sphi 0, %s137
      %s139 = sphi 0, %s137
      %s140 = sphi 0, %s139
      %s154 = sphi 0, %s140
      %s158 = sphi 0, %s158
      %s160 = sphi 0, %s158
      %s161 = sphi 0, %s160
      %s175 = sphi 0, %s161
      %s181 = sphi 0, %s183
      %s184 = sphi 0, %s181
      %s185 = sphi 0, %s184
      %s201 = sphi 0, %s185
    $region4: #{tpu_custom_call.1} parent=1 // loop_header_branch
      %22 = sbr.rel (%p20) target = $region8
    $region5: #{tpu_custom_call.1} parent=1 // loop_body
      %s24 = ssub.s32 %s19, 1
      %s25 = ssub.s32 %s19, 2
      %s26 = sadd.s32 %s19, 1
      %s27 = ssub.s32 %s19, %s26
      %p28 = scmp.eq.s32.totalorder %s27, 0
      %s30 = sadd.s32 %s29, 1
      %s31 = scalar_select %p28, %s29, %s30
      %p34 = pneg %p28
      %p35 = scmp.eq.s32.totalorder %s19, 1
      %p36 = por %p34, %p35
      %p37 = scmp.ne.s32.totalorder %s29, %s32
      %p38 = scmp.eq.s32.totalorder %s19, 0
      %p39 = por %p37, %p38
      %p40 = scmp.ne.s32.totalorder %s29, %s32
      %p41 = scmp.eq.s32.totalorder %s24, 1
      %p42 = por %p40, %p41
      %p43 = scmp.ne.s32.totalorder %s32, %s33
      %p44 = scmp.eq.s32.totalorder %s24, 0
      %p45 = por %p43, %p44
      %p46 = scmp.ne.s32.totalorder %s32, %s33
      %p47 = scmp.eq.s32.totalorder %s25, 1
      %p48 = por %p46, %p47
      %p50 = scmp.ne.s32.totalorder %s33, %s49
      %p51 = scmp.eq.s32.totalorder %s25, 0
      %p52 = por %p50, %p51
      %s54 = sadd.s32 %s53, 1
      %p57 = scmp.eq.s32.totalorder %s19, 1
      %p58 = scmp.ne.s32.totalorder %s53, %s55
      %p59 = scmp.eq.s32.totalorder %s19, 0
      %p60 = por %p58, %p59
      %p61 = scmp.ne.s32.totalorder %s53, %s55
      %p62 = scmp.eq.s32.totalorder %s24, 1
      %p63 = por %p61, %p62
      %p64 = scmp.ne.s32.totalorder %s55, %s56
      %p65 = scmp.eq.s32.totalorder %s24, 0
      %p66 = por %p64, %p65
      %p67 = scmp.ne.s32.totalorder %s55, %s56
      %p68 = scmp.eq.s32.totalorder %s25, 1
      %p69 = por %p67, %p68
      %p71 = scmp.ne.s32.totalorder %s56, %s70
      %p72 = scmp.eq.s32.totalorder %s25, 0
      %p73 = por %p71, %p72
      %s75 = sadd.s32 %s74, 1
      %p78 = scmp.eq.s32.totalorder %s19, 1
      %p79 = scmp.ne.s32.totalorder %s74, %s76
      %p80 = scmp.eq.s32.totalorder %s19, 0
      %p81 = por %p79, %p80
      %p82 = scmp.ne.s32.totalorder %s74, %s76
      %p83 = scmp.eq.s32.totalorder %s24, 1
      %p84 = por %p82, %p83
      %p85 = scmp.ne.s32.totalorder %s76, %s77
      %p86 = scmp.eq.s32.totalorder %s24, 0
      %p87 = por %p85, %p86
      %p88 = scmp.ne.s32.totalorder %s76, %s77
      %p89 = scmp.eq.s32.totalorder %s25, 1
      %p90 = por %p88, %p89
      %p92 = scmp.ne.s32.totalorder %s77, %s91
      %p93 = scmp.eq.s32.totalorder %s25, 0
      %p94 = por %p92, %p93
      %s96 = sadd.s32 %s95, 1
      %p99 = scmp.eq.s32.totalorder %s19, 1
      %p100 = scmp.ne.s32.totalorder %s95, %s97
      %p101 = scmp.eq.s32.totalorder %s19, 0
      %p102 = por %p100, %p101
      %p103 = scmp.ne.s32.totalorder %s95, %s97
      %p104 = scmp.eq.s32.totalorder %s24, 1
      %p105 = por %p103, %p104
      %p106 = scmp.ne.s32.totalorder %s97, %s98
      %p107 = scmp.eq.s32.totalorder %s24, 0
      %p108 = por %p106, %p107
      %p109 = scmp.ne.s32.totalorder %s97, %s98
      %p110 = scmp.eq.s32.totalorder %s25, 1
      %p111 = por %p109, %p110
      %p113 = scmp.ne.s32.totalorder %s98, %s112
      %p114 = scmp.eq.s32.totalorder %s25, 0
      %p115 = por %p113, %p114
      %s117 = sadd.s32 %s116, 1
      %p120 = scmp.eq.s32.totalorder %s19, 1
      %p121 = scmp.ne.s32.totalorder %s116, %s118
      %p122 = scmp.eq.s32.totalorder %s19, 0
      %p123 = por %p121, %p122
      %p124 = scmp.ne.s32.totalorder %s116, %s118
      %p125 = scmp.eq.s32.totalorder %s24, 1
      %p126 = por %p124, %p125
      %p127 = scmp.ne.s32.totalorder %s118, %s119
      %p128 = scmp.eq.s32.totalorder %s24, 0
      %p129 = por %p127, %p128
      %p130 = scmp.ne.s32.totalorder %s118, %s119
      %p131 = scmp.eq.s32.totalorder %s25, 1
      %p132 = por %p130, %p131
      %p134 = scmp.ne.s32.totalorder %s119, %s133
      %p135 = scmp.eq.s32.totalorder %s25, 0
      %p136 = por %p134, %p135
      %s138 = sadd.s32 %s137, 1
      %p141 = scmp.eq.s32.totalorder %s19, 1
      %p142 = scmp.ne.s32.totalorder %s137, %s139
      %p143 = scmp.eq.s32.totalorder %s19, 0
      %p144 = por %p142, %p143
      %p145 = scmp.ne.s32.totalorder %s137, %s139
      %p146 = scmp.eq.s32.totalorder %s24, 1
      %p147 = por %p145, %p146
      %p148 = scmp.ne.s32.totalorder %s139, %s140
      %p149 = scmp.eq.s32.totalorder %s24, 0
      %p150 = por %p148, %p149
      %p151 = scmp.ne.s32.totalorder %s139, %s140
      %p152 = scmp.eq.s32.totalorder %s25, 1
      %p153 = por %p151, %p152
      %p155 = scmp.ne.s32.totalorder %s140, %s154
      %p156 = scmp.eq.s32.totalorder %s25, 0
      %p157 = por %p155, %p156
      %s159 = sadd.s32 %s158, 1
      %p162 = scmp.eq.s32.totalorder %s19, 1
      %p163 = scmp.ne.s32.totalorder %s158, %s160
      %p164 = scmp.eq.s32.totalorder %s19, 0
      %p165 = por %p163, %p164
      %p166 = scmp.ne.s32.totalorder %s158, %s160
      %p167 = scmp.eq.s32.totalorder %s24, 1
      %p168 = por %p166, %p167
      %p169 = scmp.ne.s32.totalorder %s160, %s161
      %p170 = scmp.eq.s32.totalorder %s24, 0
      %p171 = por %p169, %p170
      %p172 = scmp.ne.s32.totalorder %s160, %s161
      %p173 = scmp.eq.s32.totalorder %s25, 1
      %p174 = por %p172, %p173
      %p176 = scmp.ne.s32.totalorder %s161, %s175
      %p177 = scmp.eq.s32.totalorder %s25, 0
      %p178 = por %p176, %p177
      %s179 = ssub.s32 %s19, %s26
      %p180 = scmp.eq.s32.totalorder %s179, 0
      %s182 = sadd.s32 %s181, 1
      %s183 = scalar_select %p180, %s181, %s182
      %p186 = pneg %p180
      %p187 = scmp.eq.s32.totalorder %s19, 1
      %p188 = por %p186, %p187
      %p189 = scmp.ne.s32.totalorder %s181, %s184
      %p190 = scmp.eq.s32.totalorder %s19, 0
      %p191 = por %p189, %p190
      %p192 = scmp.ne.s32.totalorder %s181, %s184
      %p193 = scmp.eq.s32.totalorder %s24, 1
      %p194 = por %p192, %p193
      %p195 = scmp.ne.s32.totalorder %s184, %s185
      %p196 = scmp.eq.s32.totalorder %s24, 0
      %p197 = por %p195, %p196
      %p198 = scmp.ne.s32.totalorder %s184, %s185
      %p199 = scmp.eq.s32.totalorder %s25, 1
      %p200 = por %p198, %p199
      %p202 = scmp.ne.s32.totalorder %s185, %s201
      %p203 = scmp.eq.s32.totalorder %s25, 0
      %p204 = por %p202, %p203
      %p205 = scmp.le.s32.totalorder 1, %s19
      %p206 = scmp.lt.s32.totalorder %s19, 3
      %p207 = pnand %p205, %p206
      %p208 = pneg %p207
      // Predicated region
      $region9: #{tpu_custom_call.1} parent=5 // pred_check
        _
      $region10: #{tpu_custom_call.1} parent=5 // pred_check_branch
        %210 = sbr.rel (%p207) target = $region12
      $region11: #{tpu_custom_call.1} parent=5 // pred_region
        %s211 = ssub.s32 %s19, 1
        // Predicated region
        $region13: #{tpu_custom_call.1} parent=11 // pred_check
          %p212 = pneg %p66
        $region14: #{tpu_custom_call.1} parent=11 // pred_check_branch
          %214 = sbr.rel (%p212) target = $region16
        $region15: #{tpu_custom_call.1} parent=11 // pred_region
          _
        $region16: #{tpu_custom_call.1} parent=11 // pred_fallthru
          _
        // Predicated region
        $region17: #{tpu_custom_call.1} parent=11 // pred_check
          %p215 = pneg %p87
        $region18: #{tpu_custom_call.1} parent=11 // pred_check_branch
          %217 = sbr.rel (%p215) target = $region20
        $region19: #{tpu_custom_call.1} parent=11 // pred_region
          _
        $region20: #{tpu_custom_call.1} parent=11 // pred_fallthru
          _
        // Predicated region
        $region21: #{tpu_custom_call.1} parent=11 // pred_check
          %p218 = pneg %p108
        $region22: #{tpu_custom_call.1} parent=11 // pred_check_branch
          %220 = sbr.rel (%p218) target = $region24
        $region23: #{tpu_custom_call.1} parent=11 // pred_region
          _
        $region24: #{tpu_custom_call.1} parent=11 // pred_fallthru
          _
        // Predicated region
        $region25: #{tpu_custom_call.1} parent=11 // pred_check
          %p221 = pneg %p129
        $region26: #{tpu_custom_call.1} parent=11 // pred_check_branch
          %223 = sbr.rel (%p221) target = $region28
        $region27: #{tpu_custom_call.1} parent=11 // pred_region
          _
        $region28: #{tpu_custom_call.1} parent=11 // pred_fallthru
          _
        // Predicated region
        $region29: #{tpu_custom_call.1} parent=11 // pred_check
          %p224 = pneg %p150
        $region30: #{tpu_custom_call.1} parent=11 // pred_check_branch
          %226 = sbr.rel (%p224) target = $region32
        $region31: #{tpu_custom_call.1} parent=11 // pred_region
          _
        $region32: #{tpu_custom_call.1} parent=11 // pred_fallthru
          _
        // Predicated region
        $region33: #{tpu_custom_call.1} parent=11 // pred_check
          %p227 = pneg %p171
        $region34: #{tpu_custom_call.1} parent=11 // pred_check_branch
          %229 = sbr.rel (%p227) target = $region36
        $region35: #{tpu_custom_call.1} parent=11 // pred_region
          _
        $region36: #{tpu_custom_call.1} parent=11 // pred_fallthru
          _
      $region12: #{tpu_custom_call.1} parent=5 // pred_fallthru
        _
      %p230 = scmp.lt.s32.totalorder %s19, 2
      // Predicated region
      $region37: #{tpu_custom_call.1} parent=5 // pred_check
        %p231 = pneg %p230
      $region38: #{tpu_custom_call.1} parent=5 // pred_check_branch
        %233 = sbr.rel (%p231) target = $region40
      $region39: #{tpu_custom_call.1} parent=5 // pred_region
        // Predicated region
        $region41: #{tpu_custom_call.1} parent=39 // pred_check
          %p234 = pneg %p39
        $region42: #{tpu_custom_call.1} parent=39 // pred_check_branch
          %236 = sbr.rel (%p234) target = $region44
        $region43: #{tpu_custom_call.1} parent=39 // pred_region
          %s237 = sand.u32 %s29, 1
          %s238 = scalar_lea.sflag [#allocation3], %s237
          %s239 = sand.u32 %s29, 1
          %s240 = smul.addr %s239, 8
          %s241 = scalar_lea.vmem [#allocation2], %s240
          %s243 = ssub.s32 128, 128
          %244 = vsyncadd %s238, %s243
          %s245 = smul.addr %s19, 4
          %s246 = smul.addr %s245, 32
          %s247 = scalar_lea.hbm %s0, %s246
          %s248 = sshll.u32 %s241, 4
          %s249 = int_to_ptr.vmem [resolvable:$true] %s248
          %254 = dma.hbm_to_vmem [thread:$0]  %s247, 128, %s249, %s238, 64, 64, 4
        $region44: #{tpu_custom_call.1} parent=39 // pred_fallthru
          _
      $region40: #{tpu_custom_call.1} parent=5 // pred_fallthru
        _
      %p255 = scmp.le.s32.totalorder 1, %s19
      %p256 = scmp.lt.s32.totalorder %s19, 3
      %p257 = pnand %p255, %p256
      %p258 = pneg %p257
      // Predicated region
      $region45: #{tpu_custom_call.1} parent=5 // pred_check
        _
      $region46: #{tpu_custom_call.1} parent=5 // pred_check_branch
        %260 = sbr.rel (%p257) target = $region48
      $region47: #{tpu_custom_call.1} parent=5 // pred_region
        %s261 = ssub.s32 %s19, 1
        %s262 = sand.u32 %s32, 1
        %s263 = scalar_lea.sflag [#allocation3], %s262
        %s264 = sand.u32 %s32, 1
        %s265 = smul.addr %s264, 8
        %s266 = scalar_lea.vmem [#allocation2], %s265
        // Predicated region
        $region49: #{tpu_custom_call.1} parent=47 // pred_check
          %p267 = pneg %p45
        $region50: #{tpu_custom_call.1} parent=47 // pred_check_branch
          %269 = sbr.rel (%p267) target = $region52
        $region51: #{tpu_custom_call.1} parent=47 // pred_region
          %270 = dma.done %s263, 128
        $region52: #{tpu_custom_call.1} parent=47 // pred_fallthru
          _
        %s271 = sand.u32 %s32, 1
        %s272 = scalar_lea.sflag [#allocation3], %s271
        %s273 = sand.u32 %s32, 1
        %s274 = smul.addr %s273, 8
        %s275 = scalar_lea.vmem [#allocation2], %s274
        %p276 = pneg %p45
        %p277 = pneg %p42
        %p278 = pneg %p66
        %p279 = pneg %p63
        %p280 = pneg %p87
        %p281 = pneg %p84
        %p282 = pneg %p108
        %p283 = pneg %p105
        %p284 = pneg %p129
        %p285 = pneg %p126
        %p286 = pneg %p150
        %p287 = pneg %p147
        %p288 = pneg %p171
        %p289 = pneg %p168
        %p290 = pneg %p197
        %p291 = pneg %p194
        %s292 = sand.u32 %s184, 1
        %s293 = scalar_lea.sflag [#allocation4], %s292
        %s294 = sand.u32 %s184, 1
        %s295 = smul.addr %s294, 8
        %s296 = scalar_lea.vmem [#allocation5], %s295
        %v298 = vld [vmem:[%s1] sm:$0x1]
        %v299 = vld [vmem:[%s3] sm:$0x3]
        %v300 = vld [vmem:[%s5] sm:$0x1]
        %v301 = vld [vmem:[%s2] sm:$0x3]
        %v302 = vld [vmem:[%s4] sm:$0x3]
        %v303 = vld [vmem:[%s6] sm:$0x3]
        %v304 = vlaneseq
        %v305 = vand.u32 %v304, 127
        %v306 = vadd.s32 %v305, 128
        %vm307 = vcmp.lt.s32.totalorder %v305, 0
        %v308 = vsub.s32 0, %v305
        %v309 = vsel %vm307, %v308, %v305
        %v310 = vshrl.u32 %v309, 4
        %v311 = vand.u32 %v309, 15
        %v312 = vsub.s32 0, %v311
        %v313 = vsel %vm307, %v312, %v311
        %vm314 = vcmp.lt.s32.totalorder %v306, 0
        %v315 = vsub.s32 0, %v306
        %v316 = vsel %vm314, %v315, %v306
        %v317 = vshrl.u32 %v316, 4
        %v318 = vand.u32 %v316, 15
        %v319 = vsub.s32 0, %v318
        %v320 = vsel %vm314, %v319, %v318
        %vm321 = vcmp.ne.s32.totalorder %v313, 0
        %vm322 = vcmp.ne.s32.totalorder %v320, 0
        %vm323 = vcmp.lt.s32.totalorder %v313, 0
        %vm324 = vcmp.lt.s32.totalorder %v320, 0
        %vm325 = vmand %vm323, %vm321
        %vm326 = vmand %vm324, %vm322
        %v327 = vadd.s32 %v313, 16
        %v328 = vadd.s32 %v320, 16
        %v329 = vsel %vm325, %v327, %v313
        %v330 = vsel %vm326, %v328, %v320
        %vm331 = vcmp.ge.s32.totalorder %v329, 1
        %vm332 = vcmp.ge.s32.totalorder %v330, 1
        %vm333 = vcmp.le.s32.totalorder %v329, 14
        %vm334 = vcmp.le.s32.totalorder %v330, 14
        %v335 = vld [vmem:[%s266] sm:$0xf]
        %s336 = scalar_lea.vmem %s266, 4 [#allocation2]
        %v337 = vld [vmem:[%s336] sm:$0xf]
        %v340 = vunpack.c.l.s4 1983009808
        %v341 = vunpack.c.0.s8 %v340
        %v342 = vlaneseq
        %v343 = vshrl.u32 %v342, 7
        %v344 = vsub.s32 %v341, %v343
        %v345 = vrot.slane %v337, %v344
        %v346 = vcombine.high %v345, %v345
        %v349 = vpack.c.bf16 %v345, %v345
        %v350 = vpack.c.bf16 %v346, %v346
        %352 = vset.pattern.permute.xlu0 0
        %353 = vperm.xlu0 %352, %v301
        %v354 = vpop.permute.xlu0 %353
        %vm356 = vcmask 15360
        %v358 = vsel %vm356, %v298, 0
        %vm360 = vcmask 1040384
        %v362 = vsel %vm360, %v349, 0
        %v365 = vsel %vm360, %v350, 0
        %367 = vmatprep.subr.bf16.mxu0 %v365
        %368 = vmatpush1.bf16.msra.mxu0 %v362
        %369 = vmatprep.subr.bf16.mxu0 0
        %370 = vmatpush1.bf16.msra.mxu0 0
        %371 = vmatprep.subr.bf16.mxu0 0
        %372 = vmatpush1.bf16.msra.mxu0 0
        %373 = vmatprep.subr.bf16.mxu0 0
        %374 = vmatpush1.bf16.msra.mxu0 0
        %375 = vmatprep.subr.bf16.mxu0 0
        %376 = vmatpush1.bf16.msra.mxu0 0
        %377 = vmatprep.subr.bf16.mxu0 0
        %378 = vmatpush1.bf16.msra.mxu0 0
        %379 = vmatprep.subr.bf16.mxu0 0
        %380 = vmatpush1.bf16.msra.mxu0 0
        %381 = vmatprep.subr.bf16.mxu0 0
        %382 = vmatpush1.bf16.msra.mxu0 0
        %383 = vmatprep.subr.bf16.mxu0 0
        %384 = vmatpush1.bf16.msra.mxu0 0
        %385 = vmatprep.subr.bf16.mxu0 0
        %386 = vmatpush1.bf16.msra.mxu0 0
        %387 = vmatprep.subr.bf16.mxu0 0
        %388 = vmatpush1.bf16.msra.mxu0 0
        %389 = vmatprep.subr.bf16.mxu0 0
        %390 = vmatpush1.bf16.msra.mxu0 0
        %391 = vmatprep.subr.bf16.mxu0 0
        %392 = vmatpush1.bf16.msra.mxu0 0
        %393 = vmatprep.subr.bf16.mxu0 0
        %394 = vmatpush1.bf16.msra.mxu0 0
        %395 = vmatprep.subr.bf16.mxu0 0
        %396 = vmatpush1.bf16.msra.mxu0 0
        %397 = vmatprep.subr.bf16.mxu0 0
        %398 = vmatpush1.bf16.msra.mxu0 0
        %399 = vmatprep.mubr.bf16.mxu0 0
        %400 = vmatmul.mubr.bf16.gmra.mrb[0].mxu0 %v358
        %v401 = vpop.f32.mrb[0].mxu0
        %v402 = vadd.f32 %v354, %v401
        %v403 = vpop.f32.mrb[0].mxu0
        %v404 = vadd.f32 %v354, %v403
        %v405 = vpop.f32.mrb[0].mxu0
        %v406 = vpop.f32.mrb[0].mxu0
        %407 = vdwg.mxu0
        %v408 = vmax.f32 %v402, 0.0
        %v409 = vmax.f32 %v404, 0.0
        %412 = vrot.lane.b32.xlu0 %v408, 17
        %v413 = vpop.permute.xlu0 %412
        %414 = vrot.lane.b32.xlu0 %v409, 17
        %v415 = vpop.permute.xlu0 %414
        %vm416 = vcmask 138240
        %v417 = vsel %vm416, %v413, %v415
        %v421 = vsel %vm416, 0.0, %v413
        %v422 = vsel %vm416, %v415, 0.0
        %v423 = vsel %vm331, 1, 0
        %v424 = vsel %vm332, 1, 0
        %vm425 = vcmp.eq.s32.totalorder %v423, 1
        %vm426 = vcmp.eq.s32.totalorder %v424, 1
        %v427 = vsel %vm425, %v421, 0.0
        %v428 = vsel %vm426, %v417, 0.0
        %430 = vset.pattern.permute.xlu0 0
        %431 = vperm.xlu0 %430, %v299
        %v432 = vpop.permute.xlu0 %431
        %v434 = vmul.f32 %v427, %v432
        %v435 = vmul.f32 %v428, %v432
        %v436 = vadd.f32 %v434, 0.0
        %v437 = vadd.f32 %v435, 0.0
        %438 = vset.pattern.permute.xlu0 1
        %439 = vperm.xlu0 %438, %v299
        %v440 = vpop.permute.xlu0 %439
        %v442 = vmul.f32 %v421, %v440
        %v443 = vmul.f32 %v417, %v440
        %v444 = vmul.f32 %v422, %v440
        %448 = vrot.lane.b32.xlu0 %v442, 127
        %v449 = vpop.permute.xlu0 %448
        %450 = vrot.lane.b32.xlu0 %v443, 127
        %v451 = vpop.permute.xlu0 %450
        %452 = vrot.lane.b32.xlu0 %v444, 127
        %v453 = vpop.permute.xlu0 %452
        %vm454 = vcmask 1039360
        %v455 = vsel %vm454, %v449, %v451
        %v456 = vsel %vm454, %v451, %v453
        %v459 = vadd.f32 %v436, %v455
        %v460 = vadd.f32 %v437, %v456
        %v461 = vsel %vm333, 1, 0
        %v462 = vsel %vm334, 1, 0
        %vm463 = vcmp.eq.s32.totalorder %v461, 1
        %vm464 = vcmp.eq.s32.totalorder %v462, 1
        %467 = vrot.lane.b32.xlu0 %v421, 126
        %v468 = vpop.permute.xlu0 %467
        %469 = vrot.lane.b32.xlu0 %v417, 126
        %v470 = vpop.permute.xlu0 %469
        %471 = vrot.lane.b32.xlu0 %v422, 126
        %v472 = vpop.permute.xlu0 %471
        %vm473 = vcmask 1031168
        %v474 = vsel %vm473, %v468, %v470
        %v475 = vsel %vm473, %v470, %v472
        %v478 = vsel %vm463, %v474, 0.0
        %v479 = vsel %vm464, %v475, 0.0
        %480 = vset.pattern.permute.xlu0 2
        %481 = vperm.xlu0 %480, %v299
        %v482 = vpop.permute.xlu0 %481
        %v484 = vmul.f32 %v478, %v482
        %v485 = vmul.f32 %v479, %v482
        %v486 = vadd.f32 %v459, %v484
        %v487 = vadd.f32 %v460, %v485
        %488 = vrot.lane.b32.xlu0 %v421, 112
        %v489 = vpop.permute.xlu0 %488
        %490 = vrot.lane.b32.xlu0 %v417, 112
        %v491 = vpop.permute.xlu0 %490
        %492 = vrot.lane.b32.xlu0 %v422, 112
        %v493 = vpop.permute.xlu0 %492
        %vm494 = vcmask 916480
        %v495 = vsel %vm494, %v489, %v491
        %v496 = vsel %vm494, %v491, %v493
        %v499 = vsel %vm425, %v495, 0.0
        %v500 = vsel %vm426, %v496, 0.0
        %501 = vset.pattern.permute.xlu0 3
        %502 = vperm.xlu0 %501, %v299
        %v503 = vpop.permute.xlu0 %502
        %v505 = vmul.f32 %v499, %v503
        %v506 = vmul.f32 %v500, %v503
        %v507 = vadd.f32 %v486, %v505
        %v508 = vadd.f32 %v487, %v506
        %509 = vset.pattern.permute.xlu0 4
        %510 = vperm.xlu0 %509, %v299
        %v511 = vpop.permute.xlu0 %510
        %v513 = vmul.f32 %v421, %v511
        %v514 = vmul.f32 %v417, %v511
        %v515 = vmul.f32 %v422, %v511
        %519 = vrot.lane.b32.xlu0 %v513, 111
        %v520 = vpop.permute.xlu0 %519
        %521 = vrot.lane.b32.xlu0 %v514, 111
        %v522 = vpop.permute.xlu0 %521
        %523 = vrot.lane.b32.xlu0 %v515, 111
        %v524 = vpop.permute.xlu0 %523
        %vm525 = vcmask 908288
        %v526 = vsel %vm525, %v520, %v522
        %v527 = vsel %vm525, %v522, %v524
        %v530 = vadd.f32 %v507, %v526
        %v531 = vadd.f32 %v508, %v527
        %532 = vrot.lane.b32.xlu0 %v421, 110
        %v533 = vpop.permute.xlu0 %532
        %534 = vrot.lane.b32.xlu0 %v417, 110
        %v535 = vpop.permute.xlu0 %534
        %536 = vrot.lane.b32.xlu0 %v422, 110
        %v537 = vpop.permute.xlu0 %536
        %vm538 = vcmask 900096
        %v539 = vsel %vm538, %v533, %v535
        %v540 = vsel %vm538, %v535, %v537
        %v543 = vsel %vm463, %v539, 0.0
        %v544 = vsel %vm464, %v540, 0.0
        %545 = vset.pattern.permute.xlu0 5
        %546 = vperm.xlu0 %545, %v299
        %v547 = vpop.permute.xlu0 %546
        %v549 = vmul.f32 %v543, %v547
        %v550 = vmul.f32 %v544, %v547
        %v551 = vadd.f32 %v530, %v549
        %v552 = vadd.f32 %v531, %v550
        %553 = vrot.lane.b32.xlu0 %v421, 96
        %v554 = vpop.permute.xlu0 %553
        %555 = vrot.lane.b32.xlu0 %v417, 96
        %v556 = vpop.permute.xlu0 %555
        %557 = vrot.lane.b32.xlu0 %v422, 96
        %v558 = vpop.permute.xlu0 %557
        %vm559 = vcmask 785408
        %v560 = vsel %vm559, %v554, %v556
        %v561 = vsel %vm559, %v556, %v558
        %v564 = vsel %vm425, %v560, 0.0
        %v565 = vsel %vm426, %v561, 0.0
        %566 = vset.pattern.permute.xlu0 6
        %567 = vperm.xlu0 %566, %v299
        %v568 = vpop.permute.xlu0 %567
        %v570 = vmul.f32 %v564, %v568
        %v571 = vmul.f32 %v565, %v568
        %v572 = vadd.f32 %v551, %v570
        %v573 = vadd.f32 %v552, %v571
        %574 = vset.pattern.permute.xlu0 7
        %575 = vperm.xlu0 %574, %v299
        %v576 = vpop.permute.xlu0 %575
        %v578 = vmul.f32 %v421, %v576
        %v579 = vmul.f32 %v417, %v576
        %v580 = vmul.f32 %v422, %v576
        %584 = vrot.lane.b32.xlu0 %v578, 95
        %v585 = vpop.permute.xlu0 %584
        %586 = vrot.lane.b32.xlu0 %v579, 95
        %v587 = vpop.permute.xlu0 %586
        %588 = vrot.lane.b32.xlu0 %v580, 95
        %v589 = vpop.permute.xlu0 %588
        %vm590 = vcmask 777216
        %v591 = vsel %vm590, %v585, %v587
        %v592 = vsel %vm590, %v587, %v589
        %v595 = vadd.f32 %v572, %v591
        %v596 = vadd.f32 %v573, %v592
        %597 = vrot.lane.b32.xlu0 %v421, 94
        %v598 = vpop.permute.xlu0 %597
        %599 = vrot.lane.b32.xlu0 %v417, 94
        %v600 = vpop.permute.xlu0 %599
        %601 = vrot.lane.b32.xlu0 %v422, 94
        %v602 = vpop.permute.xlu0 %601
        %vm603 = vcmask 769024
        %v604 = vsel %vm603, %v598, %v600
        %v605 = vsel %vm603, %v600, %v602
        %v608 = vsel %vm463, %v604, 0.0
        %v609 = vsel %vm464, %v605, 0.0
        %610 = vset.pattern.permute.xlu0 8
        %611 = vperm.xlu0 %610, %v299
        %v612 = vpop.permute.xlu0 %611
        %v614 = vmul.f32 %v608, %v612
        %v615 = vmul.f32 %v609, %v612
        %v616 = vadd.f32 %v595, %v614
        %v617 = vadd.f32 %v596, %v615
        %619 = vset.pattern.permute.xlu0 0
        %620 = vperm.xlu0 %619, %v302
        %v621 = vpop.permute.xlu0 %620
        %v623 = vadd.f32 %v616, %v621
        %v624 = vadd.f32 %v617, %v621
        %v625 = vpack.c.bf16 %v623, %v623
        %v626 = vpack.c.bf16 %v624, %v624
        %628 = vset.pattern.permute.xlu0 0
        %629 = vperm.xlu0 %628, %v303
        %v630 = vpop.permute.xlu0 %629
        %v633 = vsel %vm356, %v300, 0
        %v636 = vsel %vm360, %v625, 0
        %v639 = vsel %vm360, %v626, 0
        %641 = vmatprep.subr.bf16.mxu0 %v639
        %642 = vmatpush1.bf16.msra.mxu0 %v636
        %643 = vmatprep.subr.bf16.mxu0 0
        %644 = vmatpush1.bf16.msra.mxu0 0
        %645 = vmatprep.subr.bf16.mxu0 0
        %646 = vmatpush1.bf16.msra.mxu0 0
        %647 = vmatprep.subr.bf16.mxu0 0
        %648 = vmatpush1.bf16.msra.mxu0 0
        %649 = vmatprep.subr.bf16.mxu0 0
        %650 = vmatpush1.bf16.msra.mxu0 0
        %651 = vmatprep.subr.bf16.mxu0 0
        %652 = vmatpush1.bf16.msra.mxu0 0
        %653 = vmatprep.subr.bf16.mxu0 0
        %654 = vmatpush1.bf16.msra.mxu0 0
        %655 = vmatprep.subr.bf16.mxu0 0
        %656 = vmatpush1.bf16.msra.mxu0 0
        %657 = vmatprep.subr.bf16.mxu0 0
        %658 = vmatpush1.bf16.msra.mxu0 0
        %659 = vmatprep.subr.bf16.mxu0 0
        %660 = vmatpush1.bf16.msra.mxu0 0
        %661 = vmatprep.subr.bf16.mxu0 0
        %662 = vmatpush1.bf16.msra.mxu0 0
        %663 = vmatprep.subr.bf16.mxu0 0
        %664 = vmatpush1.bf16.msra.mxu0 0
        %665 = vmatprep.subr.bf16.mxu0 0
        %666 = vmatpush1.bf16.msra.mxu0 0
        %667 = vmatprep.subr.bf16.mxu0 0
        %668 = vmatpush1.bf16.msra.mxu0 0
        %669 = vmatprep.subr.bf16.mxu0 0
        %670 = vmatpush1.bf16.msra.mxu0 0
        %671 = vmatprep.subr.bf16.mxu0 0
        %672 = vmatpush1.bf16.msra.mxu0 0
        %673 = vmatprep.mubr.bf16.mxu0 0
        %674 = vmatmul.mubr.bf16.gmra.mrb[0].mxu0 %v633
        %v675 = vpop.f32.mrb[0].mxu0
        %v676 = vadd.f32 %v630, %v675
        %v677 = vpop.f32.mrb[0].mxu0
        %v678 = vadd.f32 %v630, %v677
        %v679 = vpop.f32.mrb[0].mxu0
        %v680 = vpop.f32.mrb[0].mxu0
        %681 = vdwg.mxu0
        %v682 = vmax.f32 %v676, 0.0
        %v683 = vmax.f32 %v678, 0.0
        %v686 = vunpack.c.l.s4 1966171168
        %v687 = vunpack.c.0.s8 %v686
        %v688 = vlaneseq
        %v689 = vshrl.u32 %v688, 7
        %v690 = vsub.s32 %v687, %v689
        %v691 = vrot.slane %v335, %v690
        %v692 = vcombine.high %v691, %v691
        %v695 = vlaneseq
        %vm696 = vcmp.ge.s32.totalorder %v695, 0
        %vm697 = vcmp.lt.s32.totalorder %v695, 256
        %vm698 = vmand %vm696, %vm697
        %699 = vst.msk [vmem:[%s296] ss:$2 sm:$0x3] %vm698, %v691
        %s700 = scalar_lea.vmem %s296, 4 [#allocation5]
        %701 = vst.msk [vmem:[%s700] ss:$2 sm:$0x3] %vm698, %v692
        %v704 = vcombine.low %v682, %v683
        %v706 = vunpack.c.l.s4 1966171168
        %v707 = vunpack.c.0.s8 %v706
        %v708 = vlaneseq
        %v709 = vshrl.u32 %v708, 7
        %v710 = vsub.s32 %v707, %v709
        %v711 = vrot.slane %v704, %v710
        %v712 = vcombine.high %v711, %v711
        %v714 = vunpack.c.l.s4 1966171168
        %v715 = vunpack.c.0.s8 %v714
        %v716 = vlaneseq
        %v717 = vshrl.u32 %v716, 7
        %v718 = vsub.s32 %v715, %v717
        %v719 = vrot.slane %v711, %v718
        %v721 = vunpack.c.l.s4 1966171168
        %v722 = vunpack.c.0.s8 %v721
        %v723 = vlaneseq
        %v724 = vshrl.u32 %v723, 7
        %v725 = vsub.s32 %v722, %v724
        %v726 = vrot.slane %v712, %v725
        %s729 = scalar_lea.vmem %s296, 1 [#allocation5]
        %730 = vst.msk [vmem:[%s729] ss:$2 sm:$0x3] %vm698, %v719
        %s731 = scalar_lea.vmem %s296, 5 [#allocation5]
        %732 = vst.msk [vmem:[%s731] ss:$2 sm:$0x3] %vm698, %v726
        %s733 = sand.u32 %s184, 1
        %s734 = scalar_lea.sflag [#allocation4], %s733
        %s735 = sand.u32 %s184, 1
        %s736 = smul.addr %s735, 8
        %s737 = scalar_lea.vmem [#allocation5], %s736
        // Predicated region
        $region53: #{tpu_custom_call.1} parent=47 // pred_check
          %p738 = pneg %p194
        $region54: #{tpu_custom_call.1} parent=47 // pred_check_branch
          %740 = sbr.rel (%p738) target = $region56
        $region55: #{tpu_custom_call.1} parent=47 // pred_region
          %s742 = ssub.s32 128, 128
          %743 = vsyncadd %s734, %s742
          %s744 = smul.addr %s24, 4
          %s745 = smul.addr %s744, 32
          %s746 = scalar_lea.hbm %s7, %s745
          %s747 = sshll.u32 %s737, 4
          %s748 = int_to_ptr.vmem [resolvable:$true] %s747
          %753 = dma.vmem_to_hbm [thread:$0]  %s748, 128, %s746, %s734, 64, 64, 4
        $region56: #{tpu_custom_call.1} parent=47 // pred_fallthru
          _
      $region48: #{tpu_custom_call.1} parent=5 // pred_fallthru
        _
      %p754 = scmp.le.s32.totalorder 2, %s19
      // Predicated region
      $region57: #{tpu_custom_call.1} parent=5 // pred_check
        %p755 = pneg %p754
      $region58: #{tpu_custom_call.1} parent=5 // pred_check_branch
        %757 = sbr.rel (%p755) target = $region60
      $region59: #{tpu_custom_call.1} parent=5 // pred_region
        %s758 = ssub.s32 %s19, 2
        // Predicated region
        $region61: #{tpu_custom_call.1} parent=59 // pred_check
          %p759 = pneg %p200
        $region62: #{tpu_custom_call.1} parent=59 // pred_check_branch
          %761 = sbr.rel (%p759) target = $region64
        $region63: #{tpu_custom_call.1} parent=59 // pred_region
          %s762 = sand.u32 %s185, 1
          %s763 = scalar_lea.sflag [#allocation4], %s762
          %s764 = sand.u32 %s185, 1
          %s765 = smul.addr %s764, 8
          %s766 = scalar_lea.vmem [#allocation5], %s765
          %767 = dma.done %s763, 128
        $region64: #{tpu_custom_call.1} parent=59 // pred_fallthru
          _
      $region60: #{tpu_custom_call.1} parent=5 // pred_fallthru
        _
    $region6: #{tpu_custom_call.1} parent=1 // loop_footer
      %s23 = sadd.s32 1, %s19
    $region7: #{tpu_custom_call.1} parent=1 // loop_footer_branch
      %18 = sbr.rel target = $region3
    $region8: #{tpu_custom_call.1} parent=1 // loop_exit
      _
    %768 = vsyncpa [#allocation3], 1
    %s769 = scalar_lea.sflag [#allocation3], 1
    %770 = vsyncpa %s769, 1
    %771 = vsyncpa [#allocation4], 1
    %s772 = scalar_lea.sflag [#allocation4], 1
    %773 = vsyncpa %s772, 1

</llo_original>
